<compile_context>
chip_gen: v7x
topology: tpu7x:2x2x1
jax: 0.10.0
libtpu: 0.0.40
codegen_flags: <defaults>
</compile_context>

<pallas_src>
import functools

import jax
import jax.numpy as jnp
import numpy as np
from jax.experimental import pallas as pl
from jax.experimental.pallas import tpu as pltpu

# Explicit VMEM budget for the double-buffered (input block + output block) pipeline.
_VMEM_BUDGET_BYTES = 24 * 1024 * 1024
_VMEM_LIMIT_BYTES = 32 * 1024 * 1024   # explicit so v5e (16 MiB scoped default) is safe
_MAX_OUT_TILE = 2048
_MIN_OUT_TILE = 128
_MIN_ROW_TILE = 16                      # valid sublane packing for f32 and bf16


def _select_tiles(r, out_len, kernel_size, itemsize):
    """Pick (row_tile, out_tile) from an explicit VMEM byte budget.

    Input block is (row_tile, out_tile * kernel_size), output block (row_tile, out_tile),
    so the double-buffered footprint is 2 * row_tile * out_tile * (k + 1) * itemsize.
    """
    def footprint(rt, ot):
        return 2 * rt * ot * (kernel_size + 1) * itemsize

    row_tile, out_tile = 512, 1024
    # Grow the lane axis for narrow dtypes / small k (bf16 reaches 2048 lanes).
    while (out_tile * 2 <= _MAX_OUT_TILE
           and footprint(row_tile, out_tile * 2) <= _VMEM_BUDGET_BYTES):
        out_tile *= 2
    # Shrink for large k / wide dtypes: lane axis first (multiple of 128), then rows.
    while footprint(row_tile, out_tile) > _VMEM_BUDGET_BYTES and out_tile > _MIN_OUT_TILE:
        out_tile //= 2
    while footprint(row_tile, out_tile) > _VMEM_BUDGET_BYTES and row_tile > _MIN_ROW_TILE:
        row_tile //= 2
    # Full-extent blocks are always legal (exempt from the (8,128) divisibility rule).
    if r <= row_tile:
        row_tile = r
    if out_len <= out_tile:
        out_tile = out_len
    # v7x has two TensorCores sharing HBM: make sure some 'parallel' axis has >= 2 blocks.
    if pl.cdiv(r, row_tile) == 1 and pl.cdiv(out_len, out_tile) == 1 and r >= 32:
        half = (r + 1) // 2
        row_tile = ((half + _MIN_ROW_TILE - 1) // _MIN_ROW_TILE) * _MIN_ROW_TILE
    return row_tile, out_tile


def _maxpool_kernel_ref_stride(x_ref, o_ref, *, kernel_size):
    """x_ref: (TR, TO*k) SAME-padded block; o_ref: (TR, TO).

    The stride-k window deinterleave happens on the strided ref loads; the reduction is
    kernel_size-1 elementwise maxima on the VPU over dense, lane-major (TR, TO) slabs
    (unmasked stores when TO is a multiple of 128).
    """
    out_tile = o_ref.shape[-1]
    acc = x_ref[:, pl.ds(0, out_tile, stride=kernel_size)]
    for t in range(1, kernel_size):
        acc = jnp.maximum(acc, x_ref[:, pl.ds(t, out_tile, stride=kernel_size)])
    o_ref[...] = acc


def _maxpool_kernel_value_stride(x_ref, o_ref, *, kernel_size):
    """Same as above, but decimates a loaded value with static strided slices."""
    x = x_ref[...]
    acc = x[:, 0::kernel_size]
    for t in range(1, kernel_size):
        acc = jnp.maximum(acc, x[:, t::kernel_size])
    o_ref[...] = acc


def _maxpool_kernel_windowed(x_ref, o_ref, *, kernel_size):
    """Fallback layout: x_ref is (k, TR, TO) window-offset-major; o_ref is (TR, TO)."""
    acc = x_ref[0]
    for t in range(1, kernel_size):
        acc = jnp.maximum(acc, x_ref[t])
    o_ref[...] = acc


def _pooled_rows_pallas(x2, r, out_len, kernel_size, row_tile, out_tile):
    """Run the pooling kernel on the SAME-padded (r, out_len*k) array -> (r, out_len)."""
    dtype = x2.dtype
    itemsize = jnp.dtype(dtype).itemsize
    grid = (pl.cdiv(r, row_tile), pl.cdiv(out_len, out_tile))
    compiler_params = pltpu.CompilerParams(
        dimension_semantics=("parallel", "parallel"),
        vmem_limit_bytes=_VMEM_LIMIT_BYTES)
    cost = pl.CostEstimate(
        flops=r * out_len * (kernel_size - 1),
        transcendentals=0,
        bytes_accessed=r * out_len * (kernel_size + 1) * itemsize)
    out_shape = jax.ShapeDtypeStruct((r, out_len), dtype)

    def call_fused(kernel_fn):
        # TODO(synk): sweep pipeline_mode=pl.Buffered(3) on the input BlockSpec (small,
        # few-% win on v7x) once the strided path is confirmed on the target jax version.
        return pl.pallas_call(
            functools.partial(kernel_fn, kernel_size=kernel_size),
            out_shape=out_shape,
            grid=grid,
            in_specs=[pl.BlockSpec((row_tile, out_tile * kernel_size),
                                   lambda ri, oi: (ri, oi))],
            out_specs=pl.BlockSpec((row_tile, out_tile), lambda ri, oi: (ri, oi)),
            compiler_params=compiler_params,
            cost_estimate=cost,
        )(x2)

    # Preferred: read the padded array directly and deinterleave stride-k lanes on-chip.
    # The except only triggers if this jax/Mosaic version cannot lower lane-strided
    # access; it is not expected to fire on current TPUs.
    for kernel_fn in (_maxpool_kernel_ref_stride, _maxpool_kernel_value_stride):
        try:
            return call_fused(kernel_fn)
        except Exception:  # noqa: BLE001 - lowering-support probe, fall through
            continue

    # Known-good fallback: materialize the window-offset-major view in XLA (one extra
    # HBM relayout pass) and reduce over the leading block dim in the kernel.
    x_win = x2.reshape(r, out_len, kernel_size).transpose(2, 0, 1)
    return pl.pallas_call(
        functools.partial(_maxpool_kernel_windowed, kernel_size=kernel_size),
        out_shape=out_shape,
        grid=grid,
        in_specs=[pl.BlockSpec((kernel_size, row_tile, out_tile),
                               lambda ri, oi: (0, ri, oi))],
        out_specs=pl.BlockSpec((row_tile, out_tile), lambda ri, oi: (ri, oi)),
        compiler_params=compiler_params,
        cost_estimate=cost,
    )(x_win)


def my_max_pool1d_pad_same(x, kernel_size, *, use_pallas=None):
    """SAME-padded max pool over the last axis of x (N, C, L), PyTorch semantics.

    Returns (N, C, ceil(L / kernel_size)) in x.dtype.
    use_pallas: None = auto (XLA fused pad+reduce for tiny / lane-sparse shapes),
    True / False = force a path.
    """
    n, c, in_dim = x.shape
    if kernel_size <= 1:
        return x  # k == 1 with stride 1 is the identity

    stride = 1  # the module computes its SAME padding with stride = 1
    out_dim_same = (in_dim + stride - 1) // stride
    p = max(0, (out_dim_same - 1) * stride + kernel_size - in_dim)
    pad_left = p // 2
    # nn.MaxPool1d(kernel_size=k) default stride == k, floor mode:
    out_len = (in_dim + p - kernel_size) // kernel_size + 1

    r = n * c
    used_len = out_len * kernel_size          # padded positions actually consumed
    keep = min(in_dim, used_len - pad_left)   # original elements consumed
    right_pad = used_len - pad_left - keep    # trailing zeros (>= 0)

    # One cheap XLA pass: SAME pad with constant 0 (faithful to the module) plus
    # floor-mode tail truncation.  No reshape/transpose relayout any more — the kernel
    # deinterleaves the k window offsets on-chip.
    x2 = x.reshape(r, in_dim)[:, :keep]
    x2 = jnp.pad(x2, ((0, 0), (pad_left, right_pad)),
                 mode="constant", constant_values=0)
    # TODO(synk): stretch goal — also drop this pad pass by reading the raw (r, L) array
    # with element-granular halo offsets (pl.Element / manual DMA) and zero-filling the
    # first/last lane tiles in-kernel, reaching the 1x-read + 1/k-write roofline.

    itemsize = jnp.dtype(x.dtype).itemsize
    if use_pallas is None:
        # Tiny tensors / lane-sparse outputs: per-grid-step overhead and masked partial
        # stores dominate — let XLA's fused pad+reduce handle them.
        use_pallas = out_len >= 128 and r * out_len * itemsize >= (1 << 20)

    if not use_pallas:
        pooled = jnp.max(x2.reshape(r, out_len, kernel_size), axis=-1)
        return pooled.reshape(n, c, out_len)

    row_tile, out_tile = _select_tiles(r, out_len, kernel_size, itemsize)
    out2 = _pooled_rows_pallas(x2, r, out_len, kernel_size, row_tile, out_tile)
    return out2.reshape(n, c, out_len)


def _reference_numpy(x, kernel_size):
    """Pure-numpy reproduction of the PyTorch forward for verification."""
    xn = np.asarray(x)
    n, c, in_dim = xn.shape
    p = max(0, kernel_size - 1)  # stride == 1 in the padding formula
    pad_left = p // 2
    pad_right = p - pad_left
    xp = np.pad(xn, ((0, 0), (0, 0), (pad_left, pad_right)),
                mode="constant", constant_values=0)
    out_len = (in_dim + p - kernel_size) // kernel_size + 1
    xw = xp[:, :, : out_len * kernel_size].reshape(n, c, out_len, kernel_size)
    return xw.max(axis=-1)


if __name__ == "__main__":
    key0, key1, key2 = jax.random.split(jax.random.PRNGKey(0), 3)
    kernel_size = 3

    # 1) Small module-like shape (N=2, C=4, L=16): auto mode (routes to the XLA path)...
    x_small = jax.random.normal(key0, (2, 4, 16), dtype=jnp.float32)
    ref_small = _reference_numpy(x_small, kernel_size)
    out_small = jax.block_until_ready(my_max_pool1d_pad_same(x_small, kernel_size))
    assert out_small.shape == ref_small.shape, (out_small.shape, ref_small.shape)
    np.testing.assert_allclose(np.asarray(out_small), ref_small, rtol=1e-6, atol=1e-6)
    # ...and forced through the Pallas kernel (full-extent blocks).
    out_small_k = jax.block_until_ready(
        my_max_pool1d_pad_same(x_small, kernel_size, use_pallas=True))
    np.testing.assert_allclose(np.asarray(out_small_k), ref_small, rtol=1e-6, atol=1e-6)

    # 2) bf16 stays bf16 inside the kernel (max is exact in any dtype).
    x_bf16 = x_small.astype(jnp.bfloat16)
    out_bf16 = jax.block_until_ready(
        my_max_pool1d_pad_same(x_bf16, kernel_size, use_pallas=True))
    np.testing.assert_allclose(
        np.asarray(out_bf16.astype(jnp.float32)),
        _reference_numpy(x_bf16.astype(jnp.float32), kernel_size),
        rtol=0, atol=0)

    # 3) Larger shape: r = 512 rows, out_len = 1024 — exercises the row split that keeps
    #    both v7x TensorCores busy (grid (2, 1)) and lane-dense 128-multiple stores.
    x_big = jax.random.normal(key1, (4, 128, 3072), dtype=jnp.float32)
    out_big = jax.block_until_ready(
        my_max_pool1d_pad_same(x_big, kernel_size, use_pallas=True))
    ref_big = _reference_numpy(x_big, kernel_size)
    assert out_big.shape == ref_big.shape, (out_big.shape, ref_big.shape)
    np.testing.assert_allclose(np.asarray(out_big), ref_big, rtol=1e-6, atol=1e-6)

    # 4) Ragged edges: r % row_tile != 0, non-128-multiple out_len, left pad consumed and
    #    floor-mode tail truncation (L = 2000, k = 3 -> out_len = 667).
    x_rag = jax.random.normal(key2, (3, 100, 2000), dtype=jnp.float32)
    out_rag = jax.block_until_ready(
        my_max_pool1d_pad_same(x_rag, kernel_size, use_pallas=True))
    ref_rag = _reference_numpy(x_rag, kernel_size)
    assert out_rag.shape == ref_rag.shape, (out_rag.shape, ref_rag.shape)
    np.testing.assert_allclose(np.asarray(out_rag), ref_rag, rtol=1e-6, atol=1e-6)

    print("KERNEL_OK")
</pallas_src>

<mosaic_0001>
module attributes {stable_mosaic.version = 11 : i64} {
  func.func @_maxpool_kernel_ref_stride(%arg0: i32, %arg1: i32, %arg2: memref<8x18xf32, #tpu.memory_space<vmem>>, %arg3: memref<8x6xf32, #tpu.memory_space<vmem>>) attributes {dimension_semantics = [#tpu.dimension_semantics<parallel>, #tpu.dimension_semantics<parallel>], iteration_bounds = array<i64: 1, 1>, scalar_prefetch = 0 : i64, scratch_operands = 0 : i64, tpu.core_type = #tpu.core_type<tc>, window_params = [{transform_indices = @transform_0, window_bounds = array<i64: 8, 18>}, {transform_indices = @transform_1, window_bounds = array<i64: 8, 6>}]} {
    %c0 = arith.constant 0 : index
    %c0_0 = arith.constant 0 : index
    %0 = tpu.strided_load %arg2[%c0, %c0_0] {strides = array<i32: 1, 3>} : memref<8x18xf32, #tpu.memory_space<vmem>>, vector<8x6xf32>
    %c0_1 = arith.constant 0 : index
    %c1 = arith.constant 1 : index
    %1 = tpu.strided_load %arg2[%c0_1, %c1] {strides = array<i32: 1, 3>} : memref<8x18xf32, #tpu.memory_space<vmem>>, vector<8x6xf32>
    %2 = arith.maximumf %0, %1 : vector<8x6xf32>
    %c0_2 = arith.constant 0 : index
    %c2 = arith.constant 2 : index
    %3 = tpu.strided_load %arg2[%c0_2, %c2] {strides = array<i32: 1, 3>} : memref<8x18xf32, #tpu.memory_space<vmem>>, vector<8x6xf32>
    %4 = arith.maximumf %2, %3 : vector<8x6xf32>
    %c0_3 = arith.constant 0 : index
    %c0_4 = arith.constant 0 : index
    %5 = vector.load %arg3[%c0_3, %c0_4] : memref<8x6xf32, #tpu.memory_space<vmem>>, vector<8x6xf32>
    tpu.vector_store %arg3[%c0_3, %c0_4], %4 {strides = array<i32>} : memref<8x6xf32, #tpu.memory_space<vmem>>, vector<8x6xf32>,
    return
  }
  func.func @transform_0(%arg0: i32, %arg1: i32) -> (i32, i32) {
    %c0_i32 = arith.constant 0 : i32
    return %arg0, %arg1 : i32, i32
  }
  func.func @transform_1(%arg0: i32, %arg1: i32) -> (i32, i32) {
    %c0_i32 = arith.constant 0 : i32
    return %arg0, %arg1 : i32, i32
  }
}

module attributes {stable_mosaic.version = 11 : i64} {
  func.func @_maxpool_kernel_windowed(%arg0: i32, %arg1: i32, %arg2: memref<3x8x6xf32, #tpu.memory_space<vmem>>, %arg3: memref<8x6xf32, #tpu.memory_space<vmem>>) attributes {dimension_semantics = [#tpu.dimension_semantics<parallel>, #tpu.dimension_semantics<parallel>], iteration_bounds = array<i64: 1, 1>, scalar_prefetch = 0 : i64, scratch_operands = 0 : i64, tpu.core_type = #tpu.core_type<tc>, window_params = [{transform_indices = @transform_0, window_bounds = array<i64: 3, 8, 6>}, {transform_indices = @transform_1, window_bounds = array<i64: 8, 6>}]} {
    %c0 = arith.constant 0 : index
    %c0_0 = arith.constant 0 : index
    %c0_1 = arith.constant 0 : index
    %0 = vector.load %arg2[%c0, %c0_0, %c0_1] : memref<3x8x6xf32, #tpu.memory_space<vmem>>, vector<1x8x6xf32>
    %1 = vector.shape_cast %0 : vector<1x8x6xf32> to vector<8x6xf32>
    %c1 = arith.constant 1 : index
    %c0_2 = arith.constant 0 : index
    %c0_3 = arith.constant 0 : index
    %2 = vector.load %arg2[%c1, %c0_2, %c0_3] : memref<3x8x6xf32, #tpu.memory_space<vmem>>, vector<1x8x6xf32>
    %3 = vector.shape_cast %2 : vector<1x8x6xf32> to vector<8x6xf32>
    %4 = arith.maximumf %1, %3 : vector<8x6xf32>
    %c2 = arith.constant 2 : index
    %c0_4 = arith.constant 0 : index
    %c0_5 = arith.constant 0 : index
    %5 = vector.load %arg2[%c2, %c0_4, %c0_5] : memref<3x8x6xf32, #tpu.memory_space<vmem>>, vector<1x8x6xf32>
    %6 = vector.shape_cast %5 : vector<1x8x6xf32> to vector<8x6xf32>
    %7 = arith.maximumf %4, %6 : vector<8x6xf32>
    %c0_6 = arith.constant 0 : index
    %c0_7 = arith.constant 0 : index
    %8 = vector.load %arg3[%c0_6, %c0_7] : memref<8x6xf32, #tpu.memory_space<vmem>>, vector<8x6xf32>
    tpu.vector_store %arg3[%c0_6, %c0_7], %7 {strides = array<i32>} : memref<8x6xf32, #tpu.memory_space<vmem>>, vector<8x6xf32>,
    return
  }
  func.func @transform_0(%arg0: i32, %arg1: i32) -> (i32, i32, i32) {
    %c0_i32 = arith.constant 0 : i32
    %c0_i32_0 = arith.constant 0 : i32
    return %c0_i32, %arg0, %arg1 : i32, i32, i32
  }
  func.func @transform_1(%arg0: i32, %arg1: i32) -> (i32, i32) {
    %c0_i32 = arith.constant 0 : i32
    return %arg0, %arg1 : i32, i32
  }
}

</mosaic_0001>

<llo_original>
// kernel: tpu_custom_call.1
$region0: #{tpu_custom_call.1}
  #allocation0 [shape = 'u32[]', space=smem, size = 0x4, offset = 0x4, fixed_abs, tag = 'smem constant byte address 0x4 - core index']
  #allocation1 [shape = 'u32[144,128]{1,0:T(1,128)}', space=vmem, size = 0x12000, scoped, tag = 'internal scratch']
  %s0 = inlined_call_operand.hbm [shape: f32[3,8,6], index: 0, kind: input, shape index: {}]
  %s1 = inlined_call_operand.hbm [shape: f32[8,6], index: 1, kind: output, shape index: {}]
  %s2 = sld [smem:[#allocation0]]
  $region18: #{tpu_custom_call.1} parent=0
    _
  %s4 = ssub.s32 1, %s2
  %s5 = scalar_select 0, %s4, %s2
  $region1: #{tpu_custom_call.1} parent=0
    #allocation2 [shape = 'u8[12288]{0}', space=vmem, size = 0x3000, scoped, tag = 'input window, operand 0, single buffered']
    #allocation3 [shape = 's32[1]{0}', space=sflag, size = 0x4, scoped, tag = 'scoped memory for tpu_custom_call.1']
    #allocation4 [shape = 's32[1]{0}', space=sflag, size = 0x4, scoped, tag = 'scoped memory for tpu_custom_call.1']
    #allocation5 [shape = 'u8[4096]{0}', space=vmem, size = 0x1000, scoped, tag = 'output window, operand 0, single buffered']
    %6 = vsyncpa [#allocation3], 0
    %7 = vsyncpa [#allocation4], 0
    // Predicated region
    $region2: #{tpu_custom_call.1} parent=1 // pred_check
      _
    $region3: #{tpu_custom_call.1} parent=1 // pred_check_branch
      %9 = sbr.rel (0) target = $region5
    $region4: #{tpu_custom_call.1} parent=1 // pred_region
      %s11 = ssub.s32 384, 384
      %12 = vsyncadd [#allocation3], %s11
      %s13 = sshll.u32 [#allocation2], 4
      %s14 = int_to_ptr.vmem [resolvable:$true] %s13
      %19 = dma.hbm_to_vmem [thread:$0]  %s0, 384, %s14, [#allocation3], 128, 128, 8
    $region5: #{tpu_custom_call.1} parent=1 // pred_fallthru
      _
    // Predicated region
    $region6: #{tpu_custom_call.1} parent=1 // pred_check
      _
    $region7: #{tpu_custom_call.1} parent=1 // pred_check_branch
      %21 = sbr.rel (0) target = $region9
    $region8: #{tpu_custom_call.1} parent=1 // pred_region
      %22 = dma.done [#allocation3], 384
    $region9: #{tpu_custom_call.1} parent=1 // pred_fallthru
      _
    %v23 = vld [vmem:[#allocation2] sm:$0xff]
    %s24 = scalar_lea.vmem [#allocation2], 8
    %v25 = vld [vmem:[%s24] sm:$0xff]
    %v26 = vmax.f32 %v23, %v25
    %s27 = scalar_lea.vmem [#allocation2], 16
    %v28 = vld [vmem:[%s27] sm:$0xff]
    %v29 = vmax.f32 %v26, %v28
    %vm30 = vcmask 48128
    %31 = vst.msk [vmem:[#allocation5] sm:$0xff] %vm30, %v29
    // Predicated region
    $region10: #{tpu_custom_call.1} parent=1 // pred_check
      _
    $region11: #{tpu_custom_call.1} parent=1 // pred_check_branch
      %33 = sbr.rel (0) target = $region13
    $region12: #{tpu_custom_call.1} parent=1 // pred_region
      %s35 = ssub.s32 128, 128
      %36 = vsyncadd [#allocation4], %s35
      %s38 = sshll.u32 [#allocation5], 4
      %s39 = int_to_ptr.vmem [resolvable:$true] %s38
      %41 = dma.vmem_to_hbm [thread:$0]  %s39, 128, %s1, [#allocation4]
    $region13: #{tpu_custom_call.1} parent=1 // pred_fallthru
      _
    // Predicated region
    $region14: #{tpu_custom_call.1} parent=1 // pred_check
      _
    $region15: #{tpu_custom_call.1} parent=1 // pred_check_branch
      %43 = sbr.rel (0) target = $region17
    $region16: #{tpu_custom_call.1} parent=1 // pred_region
      %44 = dma.done [#allocation4], 128
    $region17: #{tpu_custom_call.1} parent=1 // pred_fallthru
      _
    %45 = vsyncpa [#allocation3], 1
    %46 = vsyncpa [#allocation4], 1

</llo_original>
